<compile_context>
chip_gen: v6e
topology: v6e:2x2x1
jax: 0.10.0
libtpu: 0.0.40
codegen_flags: <defaults>
</compile_context>

<pallas_src>
import functools
import math

import jax
import jax.numpy as jnp
from jax.experimental import pallas as pl
from jax.experimental.pallas import tpu as pltpu

LANE = 128


def _round_up(x, m):
    return (x + m - 1) // m * m


def head_kernel(x_ref, wqkv_ref, o_ref, *, seq_len, matmul_dtype):
    # x_ref:    (BB*T, C)   folded batch*time block (fold done in the wrapper)
    # wqkv_ref: (C, 3*Hp)   fused [Wq | Wk | Wv], each padded to Hp=128 lanes
    # o_ref:    (BB*T, Hp)  lane-dense output slab (columns >= head_size are zero)
    BT, C = x_ref.shape
    Hp = o_ref.shape[-1]
    T = seq_len
    BB = BT // T

    # ---- fused QKV projection: one (BB*T, C) @ (C, 3*Hp) MXU matmul ----
    x2 = x_ref[...].astype(matmul_dtype)
    w = wqkv_ref[...].astype(matmul_dtype)
    qkv = jnp.dot(x2, w, preferred_element_type=jnp.float32)        # (BB*T, 3Hp) f32

    # 128-lane tile-boundary slices; the (BB*T,Hp)->(BB,T,Hp) reshape keeps the
    # (8,128) tiles intact because the wrapper only picks BB*T multiples of 8.
    q = qkv[:, 0 * Hp:1 * Hp].reshape(BB, T, Hp)
    k = qkv[:, 1 * Hp:2 * Hp].reshape(BB, T, Hp)
    v = qkv[:, 2 * Hp:3 * Hp].reshape(BB, T, Hp)

    # ---- attention scores: contract last dims, no materialized k.T ----
    scale = C ** (-0.5)  # matches the PyTorch module: scales by n_embd, not head_size
    wei = jnp.einsum(
        "btd,bsd->bts",
        q.astype(matmul_dtype), k.astype(matmul_dtype),
        preferred_element_type=jnp.float32,
    ) * scale                                                        # (BB, T, T) f32

    # ---- causal softmax: mask the logits BEFORE the row max (exact, no NaN path:
    #      the diagonal is always unmasked so the row max is finite) ----
    row = jax.lax.broadcasted_iota(jnp.int32, (T, T), 0)
    col = jax.lax.broadcasted_iota(jnp.int32, (T, T), 1)
    causal = (col <= row)[None, :, :]
    wei = jnp.where(causal, wei, -jnp.inf)
    m = jnp.max(wei, axis=-1, keepdims=True)
    e = jnp.exp(wei - m)                         # masked entries -> exp(-inf) = 0
    s = jnp.sum(e, axis=-1, keepdims=True)       # (BB, T, 1), always > 0

    # dropout: identity in eval mode

    # ---- weighted values; normalize the small (T, Hp) result, not the (T, T) scores ----
    out = jnp.einsum(
        "bts,bsh->bth",
        e.astype(matmul_dtype), v.astype(matmul_dtype),
        preferred_element_type=jnp.float32,
    )                                                                # (BB, T, Hp) f32
    if jnp.dtype(matmul_dtype) == jnp.dtype(jnp.float32):
        out = out / s                                   # exact path: exact divide
    else:
        out = out * pl.reciprocal(s, approx=True)       # EUP reciprocal (free slot)
    o_ref[...] = out.reshape(BT, Hp).astype(o_ref.dtype)


def pack_qkv_weights(wq, wk, wv, *, lane_pad=LANE):
    """Fuse and zero-pad the three (C, H) projection weights into one (C, 3*Hp) operand.

    Each head's columns are padded to a multiple of 128 lanes so the in-kernel
    q/k/v splits fall on vreg tile boundaries. Call once at init time and reuse.
    """
    C, H = wq.shape
    Hp = _round_up(max(H, lane_pad), lane_pad)
    pad = lambda w: jnp.pad(w, ((0, 0), (0, Hp - H)))
    return jnp.concatenate([pad(wq), pad(wk), pad(wv)], axis=1)


def _pick_batch_block(B, T, per_elem_bytes, fixed_bytes, budget_bytes):
    """Largest divisor of B whose working set fits the budget, subject to:
    - at least 2 grid steps when B >= 2 (so both v7x TensorCores get work),
    - sublane-aligned partial blocks ((BB*T) % 8 == 0)."""
    if B == 1:
        return 1
    legal = [bb for bb in range(1, B) if B % bb == 0 and (bb * T) % 8 == 0]
    fitting = [bb for bb in legal if fixed_bytes + bb * per_elem_bytes <= budget_bytes]
    if fitting:
        return max(fitting)
    if legal:
        return min(legal)
    return B  # last resort: whole batch in one step (block == full array dims)


def head_forward(x, wqkv, head_size, *, matmul_dtype=jnp.bfloat16,
                 vmem_budget_bytes=24 << 20, vmem_limit_bytes=32 << 20):
    """x: (B, T, C); wqkv: (C, 3*Hp) from pack_qkv_weights -> (B, T, head_size)."""
    B, T, C = x.shape
    Hp = wqkv.shape[1] // 3

    # Fold batch*time in XLA so the kernel sees sublane/lane-contiguous 2-D blocks.
    x2 = x.reshape(B * T, C)

    # Double-buffer-aware working-set estimate (bytes).
    out_isz = jnp.dtype(x.dtype).itemsize
    per_elem = (
        T * C * (2 * 4 + 2)            # x block (2x buffered, f32) + bf16 copy
        + T * Hp * 2 * out_isz         # output block, 2x buffered
        + T * 3 * Hp * (4 + 2)         # qkv f32 + bf16 q/k/v copies
        + T * T * (4 + 4 + 2)          # masked logits f32, exp f32, bf16 copy for AV
        + T * Hp * 4                   # f32 attention output before cast
    )
    fixed = C * 3 * Hp * (2 * 4 + 2)   # fused weight (2x buffered) + bf16 copy

    BB = _pick_batch_block(B, T, per_elem, fixed, vmem_budget_bytes)
    grid = (B // BB,)

    kernel = functools.partial(head_kernel, seq_len=T, matmul_dtype=matmul_dtype)

    out2 = pl.pallas_call(
        kernel,
        out_shape=jax.ShapeDtypeStruct((B * T, Hp), x.dtype),
        grid_spec=pltpu.PrefetchScalarGridSpec(
            num_scalar_prefetch=0,
            grid=grid,
            in_specs=[
                pl.BlockSpec((BB * T, C), lambda b: (b, 0)),
                # TODO(synk): pipeline_mode=pl.Buffered(1) would reclaim one
                # weight-sized VMEM buffer (constant index_map); left at the
                # default since the weight is tiny here.
                pl.BlockSpec((C, 3 * Hp), lambda b: (0, 0)),
            ],
            out_specs=pl.BlockSpec((BB * T, Hp), lambda b: (b, 0)),
        ),
        compiler_params=pltpu.CompilerParams(
            dimension_semantics=("parallel",),
            vmem_limit_bytes=vmem_limit_bytes,
        ),
    )(x2, wqkv)

    # Un-pad + unfold in XLA (layout plumbing, not compute).
    return out2[:, :head_size].reshape(B, T, head_size)


def head_reference(x, wk, wq, wv):
    """Plain JAX reference matching the PyTorch forward (eval mode)."""
    B, T, C = x.shape
    k = x @ wk
    q = x @ wq
    v = x @ wv
    wei = (q @ jnp.swapaxes(k, -2, -1)) * C ** (-0.5)
    mask = jnp.tril(jnp.ones((T, T), dtype=bool))
    wei = jnp.where(mask[None, :, :], wei, -jnp.inf)
    wei = jax.nn.softmax(wei, axis=-1)
    return wei @ v


if __name__ == "__main__":
    # small shapes consistent with the module's forward:
    #   batch=2, seq=8 (<= block_size), n_embd=32, head_size=16
    B, T, C, H = 2, 8, 32, 16

    key = jax.random.PRNGKey(0)
    kx, kk, kq, kv = jax.random.split(key, 4)

    x = jax.random.normal(kx, (B, T, C), dtype=jnp.float32)

    # deterministic param init (nn.Linear default: U(-1/sqrt(in), 1/sqrt(in))),
    # stored transposed as (C, H) so the kernel computes x @ W.
    bound = 1.0 / math.sqrt(C)
    wk = jax.random.uniform(kk, (C, H), jnp.float32, -bound, bound)
    wq = jax.random.uniform(kq, (C, H), jnp.float32, -bound, bound)
    wv = jax.random.uniform(kv, (C, H), jnp.float32, -bound, bound)

    # Pack the fused, lane-padded QKV weight ONCE (init-time), reuse per call.
    wqkv = pack_qkv_weights(wq, wk, wv)

    out_bf16 = head_forward(x, wqkv, H)                               # bf16 MXU path
    out_f32 = head_forward(x, wqkv, H, matmul_dtype=jnp.float32)      # exact path
    out_bf16, out_f32 = jax.block_until_ready((out_bf16, out_f32))

    ref = head_reference(x, wk, wq, wv)
    assert out_f32.shape == (B, T, H) and out_bf16.shape == (B, T, H)
    assert jnp.allclose(out_f32, ref, atol=5e-3, rtol=5e-3), (
        f"f32 path max abs err {jnp.max(jnp.abs(out_f32 - ref))}"
    )
    assert jnp.allclose(out_bf16, ref, atol=3e-2, rtol=3e-2), (
        f"bf16 path max abs err {jnp.max(jnp.abs(out_bf16 - ref))}"
    )

    print("KERNEL_OK")
</pallas_src>

<mosaic_0001>
module attributes {stable_mosaic.version = 11 : i64} {
  func.func @head_kernel(%arg0: i32, %arg1: memref<8x32xf32, #tpu.memory_space<vmem>>, %arg2: memref<32x384xf32, #tpu.memory_space<vmem>>, %arg3: memref<8x128xf32, #tpu.memory_space<vmem>>) attributes {dimension_semantics = [#tpu.dimension_semantics<parallel>], iteration_bounds = array<i64: 2>, scalar_prefetch = 0 : i64, scratch_operands = 0 : i64, tpu.core_type = #tpu.core_type<tc>, window_params = [{transform_indices = @transform_0, window_bounds = array<i64: 8, 32>}, {pipeline_mode = #tpu.pipeline_mode<synchronous>, transform_indices = @transform_1, window_bounds = array<i64: 32, 384>}, {transform_indices = @transform_2, window_bounds = array<i64: 8, 128>}]} {
    %c0 = arith.constant 0 : index
    %c0_0 = arith.constant 0 : index
    %0 = vector.load %arg1[%c0, %c0_0] : memref<8x32xf32, #tpu.memory_space<vmem>>, vector<8x32xf32>
    %1 = arith.truncf %0 : vector<8x32xf32> to vector<8x32xbf16>
    %c0_1 = arith.constant 0 : index
    %c0_2 = arith.constant 0 : index
    %2 = vector.load %arg2[%c0_1, %c0_2] : memref<32x384xf32, #tpu.memory_space<vmem>>, vector<32x384xf32>
    %3 = arith.truncf %2 : vector<32x384xf32> to vector<32x384xbf16>
    %cst = arith.constant dense<0.000000e+00> : vector<8x384xf32>
    %4 = tpu.matmul %1, %3, %cst {dimension_numbers = #tpu.dot_dimension_numbers<[1], [0], [0], [1], [0, 0, 1, 1], [], []>} : vector<8x32xbf16>, vector<32x384xbf16>, vector<8x384xf32> -> vector<8x384xf32>
    %5 = vector.extract_strided_slice %4 {offsets = [0, 0], sizes = [8, 128], strides = [1, 1]} : vector<8x384xf32> to vector<8x128xf32>
    %6 = vector.shape_cast %5 : vector<8x128xf32> to vector<1x8x128xf32>
    %7 = vector.extract_strided_slice %4 {offsets = [0, 128], sizes = [8, 128], strides = [1, 1]} : vector<8x384xf32> to vector<8x128xf32>
    %8 = vector.shape_cast %7 : vector<8x128xf32> to vector<1x8x128xf32>
    %9 = vector.extract_strided_slice %4 {offsets = [0, 256], sizes = [8, 128], strides = [1, 1]} : vector<8x384xf32> to vector<8x128xf32>
    %10 = vector.shape_cast %9 : vector<8x128xf32> to vector<1x8x128xf32>
    %11 = arith.truncf %6 : vector<1x8x128xf32> to vector<1x8x128xbf16>
    %12 = arith.truncf %8 : vector<1x8x128xf32> to vector<1x8x128xbf16>
    "tpu.trace_start"() <{level = 10 : i32, message = "btd,bsd->bts"}> : () -> ()
    %cst_3 = arith.constant dense<0.000000e+00> : vector<1x8x8xf32>
    %13 = tpu.matmul %11, %12, %cst_3 {dimension_numbers = #tpu.dot_dimension_numbers<[2], [2], [1], [1], [0, 0, 0, 1, 1, 1], [0], [0]>} : vector<1x8x128xbf16>, vector<1x8x128xbf16>, vector<1x8x8xf32> -> vector<1x8x8xf32>
    "tpu.trace_stop"() : () -> ()
    %cst_4 = arith.constant 0.176776692 : f32
    %14 = vector.broadcast %cst_4 : f32 to vector<1x8x8xf32>
    %15 = arith.mulf %13, %14 : vector<1x8x8xf32>
    %16 = tpu.iota {dimensions = array<i32: 0>} : vector<8x8xi32>
    %17 = tpu.iota {dimensions = array<i32: 1>} : vector<8x8xi32>
    %18 = arith.cmpi sle, %17, %16 : vector<8x8xi32>
    %19 = vector.shape_cast %18 : vector<8x8xi1> to vector<1x8x8xi1>
    %cst_5 = arith.constant 0xFF800000 : f32
    %20 = vector.broadcast %cst_5 : f32 to vector<1x8x8xf32>
    %21 = arith.select %19, %15, %20 : vector<1x8x8xi1>, vector<1x8x8xf32>
    %cst_6 = arith.constant dense<0xFF800000> : vector<1x8xf32>
    %22 = vector.multi_reduction <maximumf>, %21, %cst_6 [2] : vector<1x8x8xf32> to vector<1x8xf32>
    %23 = vector.shape_cast %22 : vector<1x8xf32> to vector<1x8x1xf32>
    %24 = vector.broadcast %23 : vector<1x8x1xf32> to vector<1x8x8xf32>
    %25 = arith.subf %21, %24 : vector<1x8x8xf32>
    %26 = math.exp %25 : vector<1x8x8xf32>
    %cst_7 = arith.constant dense<0.000000e+00> : vector<1x8xf32>
    %27 = vector.multi_reduction <add>, %26, %cst_7 [2] : vector<1x8x8xf32> to vector<1x8xf32>
    %28 = vector.shape_cast %27 : vector<1x8xf32> to vector<1x8x1xf32>
    %29 = arith.truncf %26 : vector<1x8x8xf32> to vector<1x8x8xbf16>
    %30 = arith.truncf %10 : vector<1x8x128xf32> to vector<1x8x128xbf16>
    "tpu.trace_start"() <{level = 10 : i32, message = "bts,bsh->bth"}> : () -> ()
    %cst_8 = arith.constant dense<0.000000e+00> : vector<1x8x128xf32>
    %31 = tpu.matmul %29, %30, %cst_8 {dimension_numbers = #tpu.dot_dimension_numbers<[2], [1], [1], [2], [0, 0, 0, 1, 1, 2], [0], [0]>} : vector<1x8x8xbf16>, vector<1x8x128xbf16>, vector<1x8x128xf32> -> vector<1x8x128xf32>
    "tpu.trace_stop"() : () -> ()
    %32 = tpu.reciprocal %28 {approx = true} : vector<1x8x1xf32> -> vector<1x8x1xf32>
    %33 = vector.broadcast %32 : vector<1x8x1xf32> to vector<1x8x128xf32>
    %34 = arith.mulf %31, %33 : vector<1x8x128xf32>
    %35 = vector.shape_cast %34 : vector<1x8x128xf32> to vector<8x128xf32>
    %c0_9 = arith.constant 0 : index
    %c0_10 = arith.constant 0 : index
    %36 = vector.load %arg3[%c0_9, %c0_10] : memref<8x128xf32, #tpu.memory_space<vmem>>, vector<8x128xf32>
    tpu.vector_store %arg3[%c0_9, %c0_10], %35 {strides = array<i32>} : memref<8x128xf32, #tpu.memory_space<vmem>>, vector<8x128xf32>,
    return
  }
  func.func @transform_0(%arg0: i32) -> (i32, i32) {
    %c0_i32 = arith.constant 0 : i32
    %c0_i32_0 = arith.constant 0 : i32
    return %arg0, %c0_i32 : i32, i32
  }
  func.func @transform_1(%arg0: i32) -> (i32, i32) {
    %c0_i32 = arith.constant 0 : i32
    %c0_i32_0 = arith.constant 0 : i32
    %c0_i32_1 = arith.constant 0 : i32
    return %c0_i32, %c0_i32_0 : i32, i32
  }
  func.func @transform_2(%arg0: i32) -> (i32, i32) {
    %c0_i32 = arith.constant 0 : i32
    %c0_i32_0 = arith.constant 0 : i32
    return %arg0, %c0_i32 : i32, i32
  }
}

</mosaic_0001>

<llo_original>
// kernel: tpu_custom_call.1
$region0: #{tpu_custom_call.1}
  #allocation0 [shape = 'u32[]', space=smem, size = 0x4, offset = 0x4, fixed_abs, tag = 'smem constant byte address 0x4 - core index']
  #allocation1 [shape = 'u32[144,128]{1,0:T(1,128)}', space=vmem, size = 0x12000, scoped, tag = 'internal scratch']
  %s0 = inlined_call_operand.hbm [shape: f32[16,32], index: 0, kind: input, shape index: {}]
  %s1 = inlined_call_operand.hbm [shape: f32[32,384], index: 1, kind: input, shape index: {}]
  %s2 = inlined_call_operand.hbm [shape: f32[16,128], index: 2, kind: output, shape index: {}]
  %s3 = sld [smem:[#allocation0]]
  $region49: #{tpu_custom_call.1} parent=0
    _
  %s5 = ssub.s32 1, %s3
  %s6 = scalar_select 0, %s5, %s3
  $region1: #{tpu_custom_call.1} parent=0
    #allocation2 [shape = 'u8[8192]{0}', space=vmem, size = 0x2000, scoped, tag = 'input window, operand 0']
    #allocation3 [shape = 's32[2]{0}', space=sflag, size = 0x8, scoped, tag = 'scoped memory for tpu_custom_call.1']
    #allocation4 [shape = 's32[2]{0}', space=sflag, size = 0x8, scoped, tag = 'scoped memory for tpu_custom_call.1']
    #allocation5 [shape = 'u8[49152]{0}', space=vmem, size = 0xc000, scoped, tag = 'input window, operand 1, single buffered']
    #allocation6 [shape = 's32[1]{0}', space=sflag, size = 0x4, scoped, tag = 'scoped memory for tpu_custom_call.1']
    #allocation7 [shape = 'u8[8192]{0}', space=vmem, size = 0x2000, scoped, tag = 'output window, operand 0']
    %7 = vsyncpa [#allocation3], 0
    %s8 = scalar_lea.sflag [#allocation3], 1
    %9 = vsyncpa %s8, 0
    %10 = vsyncpa [#allocation6], 0
    %11 = vsyncpa [#allocation4], 0
    %s12 = scalar_lea.sflag [#allocation4], 1
    %13 = vsyncpa %s12, 0
    loop: start=0, step=1, limit=4
    $region2: #{tpu_custom_call.1} parent=1 // loop_pre_header
      _
    $region3: #{tpu_custom_call.1} parent=1 // loop_header
      %s15 = sphi 0, %s19
      %p16 = scmp.ge.s32.totalorder %s15, 4
      %s25 = sphi 0, %s27
      %s28 = sphi 0, %s25
      %s29 = sphi 0, %s28
      %s45 = sphi 0, %s29
      %s49 = sphi 0, %s49
      %s51 = sphi 0, %s49
      %s52 = sphi 0, %s51
      %s66 = sphi 0, %s52
      %s72 = sphi 0, %s74
      %s75 = sphi 0, %s72
      %s76 = sphi 0, %s75
      %s92 = sphi 0, %s76
    $region4: #{tpu_custom_call.1} parent=1 // loop_header_branch
      %18 = sbr.rel (%p16) target = $region8
    $region5: #{tpu_custom_call.1} parent=1 // loop_body
      %s20 = ssub.s32 %s15, 1
      %s21 = ssub.s32 %s15, 2
      %s22 = sadd.s32 %s15, 1
      %s23 = ssub.s32 %s15, %s22
      %p24 = scmp.eq.s32.totalorder %s23, 0
      %s26 = sadd.s32 %s25, 1
      %s27 = scalar_select %p24, %s25, %s26
      %p30 = pneg %p24
      %p31 = scmp.eq.s32.totalorder %s15, 1
      %p32 = por %p30, %p31
      %p33 = scmp.ne.s32.totalorder %s25, %s28
      %p34 = scmp.eq.s32.totalorder %s15, 0
      %p35 = por %p33, %p34
      %p36 = scmp.ne.s32.totalorder %s25, %s28
      %p37 = scmp.eq.s32.totalorder %s20, 1
      %p38 = por %p36, %p37
      %p39 = scmp.ne.s32.totalorder %s28, %s29
      %p40 = scmp.eq.s32.totalorder %s20, 0
      %p41 = por %p39, %p40
      %p42 = scmp.ne.s32.totalorder %s28, %s29
      %p43 = scmp.eq.s32.totalorder %s21, 1
      %p44 = por %p42, %p43
      %p46 = scmp.ne.s32.totalorder %s29, %s45
      %p47 = scmp.eq.s32.totalorder %s21, 0
      %p48 = por %p46, %p47
      %s50 = sadd.s32 %s49, 1
      %p53 = scmp.eq.s32.totalorder %s15, 1
      %p54 = scmp.ne.s32.totalorder %s49, %s51
      %p55 = scmp.eq.s32.totalorder %s15, 0
      %p56 = por %p54, %p55
      %p57 = scmp.ne.s32.totalorder %s49, %s51
      %p58 = scmp.eq.s32.totalorder %s20, 1
      %p59 = por %p57, %p58
      %p60 = scmp.ne.s32.totalorder %s51, %s52
      %p61 = scmp.eq.s32.totalorder %s20, 0
      %p62 = por %p60, %p61
      %p63 = scmp.ne.s32.totalorder %s51, %s52
      %p64 = scmp.eq.s32.totalorder %s21, 1
      %p65 = por %p63, %p64
      %p67 = scmp.ne.s32.totalorder %s52, %s66
      %p68 = scmp.eq.s32.totalorder %s21, 0
      %p69 = por %p67, %p68
      %s70 = ssub.s32 %s15, %s22
      %p71 = scmp.eq.s32.totalorder %s70, 0
      %s73 = sadd.s32 %s72, 1
      %s74 = scalar_select %p71, %s72, %s73
      %p77 = pneg %p71
      %p78 = scmp.eq.s32.totalorder %s15, 1
      %p79 = por %p77, %p78
      %p80 = scmp.ne.s32.totalorder %s72, %s75
      %p81 = scmp.eq.s32.totalorder %s15, 0
      %p82 = por %p80, %p81
      %p83 = scmp.ne.s32.totalorder %s72, %s75
      %p84 = scmp.eq.s32.totalorder %s20, 1
      %p85 = por %p83, %p84
      %p86 = scmp.ne.s32.totalorder %s75, %s76
      %p87 = scmp.eq.s32.totalorder %s20, 0
      %p88 = por %p86, %p87
      %p89 = scmp.ne.s32.totalorder %s75, %s76
      %p90 = scmp.eq.s32.totalorder %s21, 1
      %p91 = por %p89, %p90
      %p93 = scmp.ne.s32.totalorder %s76, %s92
      %p94 = scmp.eq.s32.totalorder %s21, 0
      %p95 = por %p93, %p94
      %p96 = scmp.le.s32.totalorder 1, %s15
      %p97 = scmp.lt.s32.totalorder %s15, 3
      %p98 = pnand %p96, %p97
      %p99 = pneg %p98
      // Predicated region
      $region9: #{tpu_custom_call.1} parent=5 // pred_check
        _
      $region10: #{tpu_custom_call.1} parent=5 // pred_check_branch
        %101 = sbr.rel (%p98) target = $region12
      $region11: #{tpu_custom_call.1} parent=5 // pred_region
        %s102 = ssub.s32 %s15, 1
        // Predicated region
        $region13: #{tpu_custom_call.1} parent=11 // pred_check
          %p103 = pneg %p62
        $region14: #{tpu_custom_call.1} parent=11 // pred_check_branch
          %105 = sbr.rel (%p103) target = $region16
        $region15: #{tpu_custom_call.1} parent=11 // pred_region
          %s107 = ssub.s32 1536, 1536
          %108 = vsyncadd [#allocation6], %s107
          %s109 = sshll.u32 [#allocation5], 4
          %s110 = int_to_ptr.vmem [resolvable:$true] %s109
          %115 = dma.hbm_to_vmem [thread:$0]  %s1, 1536, %s110, [#allocation6], 384, 384, 24
        $region16: #{tpu_custom_call.1} parent=11 // pred_fallthru
          _
      $region12: #{tpu_custom_call.1} parent=5 // pred_fallthru
        _
      %p116 = scmp.lt.s32.totalorder %s15, 2
      // Predicated region
      $region17: #{tpu_custom_call.1} parent=5 // pred_check
        %p117 = pneg %p116
      $region18: #{tpu_custom_call.1} parent=5 // pred_check_branch
        %119 = sbr.rel (%p117) target = $region20
      $region19: #{tpu_custom_call.1} parent=5 // pred_region
        // Predicated region
        $region21: #{tpu_custom_call.1} parent=19 // pred_check
          %p120 = pneg %p35
        $region22: #{tpu_custom_call.1} parent=19 // pred_check_branch
          %122 = sbr.rel (%p120) target = $region24
        $region23: #{tpu_custom_call.1} parent=19 // pred_region
          %s123 = sand.u32 %s25, 1
          %s124 = scalar_lea.sflag [#allocation3], %s123
          %s125 = sand.u32 %s25, 1
          %s126 = smul.addr %s125, 8
          %s127 = scalar_lea.vmem [#allocation2], %s126
          %s129 = ssub.s32 128, 128
          %130 = vsyncadd %s124, %s129
          %s131 = smul.addr %s15, 128
          %s132 = scalar_lea.hbm %s0, %s131
          %s134 = sshll.u32 %s127, 4
          %s135 = int_to_ptr.vmem [resolvable:$true] %s134
          %137 = dma.hbm_to_vmem [thread:$0]  %s132, 128, %s135, %s124
        $region24: #{tpu_custom_call.1} parent=19 // pred_fallthru
          _
      $region20: #{tpu_custom_call.1} parent=5 // pred_fallthru
        _
      %p138 = scmp.le.s32.totalorder 1, %s15
      %p139 = scmp.lt.s32.totalorder %s15, 3
      %p140 = pnand %p138, %p139
      %p141 = pneg %p140
      // Predicated region
      $region25: #{tpu_custom_call.1} parent=5 // pred_check
        _
      $region26: #{tpu_custom_call.1} parent=5 // pred_check_branch
        %143 = sbr.rel (%p140) target = $region28
      $region27: #{tpu_custom_call.1} parent=5 // pred_region
        %s144 = ssub.s32 %s15, 1
        %s145 = sand.u32 %s28, 1
        %s146 = scalar_lea.sflag [#allocation3], %s145
        %s147 = sand.u32 %s28, 1
        %s148 = smul.addr %s147, 8
        %s149 = scalar_lea.vmem [#allocation2], %s148
        // Predicated region
        $region29: #{tpu_custom_call.1} parent=27 // pred_check
          %p150 = pneg %p41
        $region30: #{tpu_custom_call.1} parent=27 // pred_check_branch
          %152 = sbr.rel (%p150) target = $region32
        $region31: #{tpu_custom_call.1} parent=27 // pred_region
          %153 = dma.done %s146, 128
        $region32: #{tpu_custom_call.1} parent=27 // pred_fallthru
          _
        // Predicated region
        $region33: #{tpu_custom_call.1} parent=27 // pred_check
          %p154 = pneg %p62
        $region34: #{tpu_custom_call.1} parent=27 // pred_check_branch
          %156 = sbr.rel (%p154) target = $region36
        $region35: #{tpu_custom_call.1} parent=27 // pred_region
          %157 = dma.done [#allocation6], 1536
        $region36: #{tpu_custom_call.1} parent=27 // pred_fallthru
          _
        %s158 = sand.u32 %s28, 1
        %s159 = scalar_lea.sflag [#allocation3], %s158
        %s160 = sand.u32 %s28, 1
        %s161 = smul.addr %s160, 8
        %s162 = scalar_lea.vmem [#allocation2], %s161
        %p163 = pneg %p41
        %p164 = pneg %p38
        %p165 = pneg %p62
        %p166 = pneg %p59
        %p167 = pneg %p88
        %p168 = pneg %p85
        %s169 = sand.u32 %s75, 1
        %s170 = scalar_lea.sflag [#allocation4], %s169
        %s171 = sand.u32 %s75, 1
        %s172 = smul.addr %s171, 8
        %s173 = scalar_lea.vmem [#allocation7], %s172
        %v175 = vld [vmem:[%s149] sm:$0xff]
        %v176 = vpack.c.bf16 %v175, %v175
        %v177 = vld [vmem:[#allocation5] sm:$0xff]
        %v178 = vld [vmem:[#allocation5 + $0x8] sm:$0xff]
        %v179 = vld [vmem:[#allocation5 + $0x10] sm:$0xff]
        %v180 = vld [vmem:[#allocation5 + $0x18] sm:$0xff]
        %v181 = vld [vmem:[#allocation5 + $0x20] sm:$0xff]
        %v182 = vld [vmem:[#allocation5 + $0x28] sm:$0xff]
        %v183 = vld [vmem:[#allocation5 + $0x30] sm:$0xff]
        %v184 = vld [vmem:[#allocation5 + $0x38] sm:$0xff]
        %v185 = vld [vmem:[#allocation5 + $0x40] sm:$0xff]
        %v186 = vld [vmem:[#allocation5 + $0x48] sm:$0xff]
        %v187 = vld [vmem:[#allocation5 + $0x50] sm:$0xff]
        %v188 = vld [vmem:[#allocation5 + $0x58] sm:$0xff]
        %v189 = vpack.c.bf16 %v180, %v177
        %v190 = vpack.c.bf16 %v181, %v178
        %v191 = vpack.c.bf16 %v182, %v179
        %v192 = vpack.c.bf16 %v186, %v183
        %v193 = vpack.c.bf16 %v187, %v184
        %v194 = vpack.c.bf16 %v188, %v185
        %vm195 = vcmask 261120
        %v197 = vsel %vm195, %v176, 0
        %199 = vmatprep.subr.bf16.mxu0 0
        %200 = vmatpush1.bf16.msra.mxu0 0
        %201 = vmatprep.subr.bf16.mxu0 0
        %202 = vmatpush1.bf16.msra.mxu0 0
        %203 = vmatprep.subr.bf16.mxu0 0
        %204 = vmatpush1.bf16.msra.mxu0 0
        %205 = vmatprep.subr.bf16.mxu0 0
        %206 = vmatpush1.bf16.msra.mxu0 0
        %207 = vmatprep.subr.bf16.mxu0 0
        %208 = vmatpush1.bf16.msra.mxu0 0
        %209 = vmatprep.subr.bf16.mxu0 0
        %210 = vmatpush1.bf16.msra.mxu0 0
        %211 = vmatprep.subr.bf16.mxu0 %v193
        %212 = vmatpush1.bf16.msra.mxu0 %v192
        %213 = vmatprep.subr.bf16.mxu0 %v190
        %214 = vmatpush1.bf16.msra.mxu0 %v189
        %215 = vmatprep.subr.bf16.mxu0 0
        %216 = vmatpush2.bf16.msra.mxu0 0
        %217 = vmatprep.subr.bf16.mxu0 0
        %218 = vmatpush2.bf16.msra.mxu0 0
        %219 = vmatprep.subr.bf16.mxu0 0
        %220 = vmatpush2.bf16.msra.mxu0 0
        %221 = vmatprep.subr.bf16.mxu0 0
        %222 = vmatpush2.bf16.msra.mxu0 0
        %223 = vmatprep.subr.bf16.mxu0 0
        %224 = vmatpush2.bf16.msra.mxu0 0
        %225 = vmatprep.subr.bf16.mxu0 0
        %226 = vmatpush2.bf16.msra.mxu0 0
        %227 = vmatprep.subr.bf16.mxu0 0
        %228 = vmatpush2.bf16.msra.mxu0 0
        %229 = vmatprep.subr.bf16.mxu0 0
        %230 = vmatpush2.bf16.msra.mxu0 0
        %231 = vmatprep.mubr.bf16.mxu0 0
        %232 = vmatmul.mubr.bf16.gmra.mxu0 %v197
        %v233 = vpop.f32.mrf.mxu0
        %v234 = vadd.f32 0.0, %v233
        %v235 = vpop.f32.mrf.mxu0
        %v236 = vadd.f32 0.0, %v235
        %v237 = vpop.f32.mrf.mxu0
        %v238 = vpop.f32.mrf.mxu0
        %239 = vdwg.mxu0
        %240 = vmatprep.subr.bf16.mxu0 0
        %241 = vmatpush1.bf16.msra.mxu0 0
        %242 = vmatprep.subr.bf16.mxu0 0
        %243 = vmatpush1.bf16.msra.mxu0 0
        %244 = vmatprep.subr.bf16.mxu0 0
        %245 = vmatpush1.bf16.msra.mxu0 0
        %246 = vmatprep.subr.bf16.mxu0 0
        %247 = vmatpush1.bf16.msra.mxu0 0
        %248 = vmatprep.subr.bf16.mxu0 0
        %249 = vmatpush1.bf16.msra.mxu0 0
        %250 = vmatprep.subr.bf16.mxu0 0
        %251 = vmatpush1.bf16.msra.mxu0 0
        %252 = vmatprep.subr.bf16.mxu0 0
        %253 = vmatpush1.bf16.msra.mxu0 %v194
        %254 = vmatprep.subr.bf16.mxu0 0
        %255 = vmatpush1.bf16.msra.mxu0 %v191
        %256 = vmatprep.subr.bf16.mxu0 0
        %257 = vmatpush2.bf16.msra.mxu0 0
        %258 = vmatprep.subr.bf16.mxu0 0
        %259 = vmatpush2.bf16.msra.mxu0 0
        %260 = vmatprep.subr.bf16.mxu0 0
        %261 = vmatpush2.bf16.msra.mxu0 0
        %262 = vmatprep.subr.bf16.mxu0 0
        %263 = vmatpush2.bf16.msra.mxu0 0
        %264 = vmatprep.subr.bf16.mxu0 0
        %265 = vmatpush2.bf16.msra.mxu0 0
        %266 = vmatprep.subr.bf16.mxu0 0
        %267 = vmatpush2.bf16.msra.mxu0 0
        %268 = vmatprep.subr.bf16.mxu0 0
        %269 = vmatpush2.bf16.msra.mxu0 0
        %270 = vmatprep.subr.bf16.mxu0 0
        %271 = vmatpush2.bf16.msra.mxu0 0
        %272 = vmatprep.mubr.bf16.mxu0 0
        %273 = vmatmul.mubr.bf16.gmra.mxu0 %v197
        %v274 = vpop.f32.mrf.mxu0
        %v275 = vadd.f32 0.0, %v274
        %v276 = vpop.f32.mrf.mxu0
        %v277 = vpop.f32.mrf.mxu0
        %v278 = vpop.f32.mrf.mxu0
        %279 = vdwg.mxu0
        %v280 = vpack.c.bf16 %v234, %v234
        %v281 = vpack.c.bf16 %v236, %v236
        %282 = vmatprep.subr.bf16.mxu0 0
        %283 = vmatpush1.bf16.xpose.msra.mxu0 0
        %284 = vmatprep.subr.bf16.mxu0 0
        %285 = vmatpush1.bf16.xpose.msra.mxu0 0
        %286 = vmatprep.subr.bf16.mxu0 0
        %287 = vmatpush1.bf16.xpose.msra.mxu0 0
        %288 = vmatprep.subr.bf16.mxu0 0
        %289 = vmatpush1.bf16.xpose.msra.mxu0 0
        %290 = vmatprep.subr.bf16.mxu0 0
        %291 = vmatpush1.bf16.xpose.msra.mxu0 0
        %292 = vmatprep.subr.bf16.mxu0 0
        %293 = vmatpush1.bf16.xpose.msra.mxu0 0
        %294 = vmatprep.subr.bf16.mxu0 0
        %295 = vmatpush1.bf16.xpose.msra.mxu0 0
        %296 = vmatprep.subr.bf16.mxu0 0
        %297 = vmatpush1.bf16.xpose.msra.mxu0 %v281
        %298 = vmatprep.subr.bf16.mxu0 0
        %299 = vmatpush2.bf16.xpose.msra.mxu0 0
        %300 = vmatprep.subr.bf16.mxu0 0
        %301 = vmatpush2.bf16.xpose.msra.mxu0 0
        %302 = vmatprep.subr.bf16.mxu0 0
        %303 = vmatpush2.bf16.xpose.msra.mxu0 0
        %304 = vmatprep.subr.bf16.mxu0 0
        %305 = vmatpush2.bf16.xpose.msra.mxu0 0
        %306 = vmatprep.subr.bf16.mxu0 0
        %307 = vmatpush2.bf16.xpose.msra.mxu0 0
        %308 = vmatprep.subr.bf16.mxu0 0
        %309 = vmatpush2.bf16.xpose.msra.mxu0 0
        %310 = vmatprep.subr.bf16.mxu0 0
        %311 = vmatpush2.bf16.xpose.msra.mxu0 0
        %312 = vmatprep.subr.bf16.mxu0 0
        %313 = vmatpush2.bf16.xpose.msra.mxu0 0
        %314 = vmatprep.mubr.bf16.mxu0 0
        %315 = vmatmul.mubr.bf16.gmra.mxu0 %v280
        %v316 = vpop.f32.mrf.mxu0
        %v317 = vadd.f32 0.0, %v316
        %v318 = vpop.f32.mrf.mxu0
        %v319 = vpop.f32.mrf.mxu0
        %v320 = vpop.f32.mrf.mxu0
        %321 = vdwg.mxu0
        %v322 = vmul.f32 %v317, 0.17677669
        %v323 = vlaneseq
        %v324 = vshrl.u32 %v323, 7
        %v325 = vlaneseq
        %v326 = vand.u32 %v325, 127
        %vm327 = vcmp.le.s32.totalorder %v326, %v324
        %v328 = vsel %vm327, %v322, -inf
        %vm329 = vcmask 64512
        %v330 = vsel %vm329, %v328, -inf
        %331 = vmax.xlane.f32.xlu0 %v330
        %v332 = vpop.xlane.xlu0 %331
        %v333 = vsub.f32 %v328, %v332
        %v334 = vmul.f32 %v333, 1.442695
        %v335 = vpow.pop %v334
        %v336 = vsel %vm329, %v335, 0.0
        %337 = vadd.xlane.f32.xlu0 %v336
        %v338 = vpop.xlane.xlu0 %337
        %v339 = vpack.c.bf16 %v335, %v335
        %v340 = vpack.c.bf16 %v275, %v275
        %v342 = vsel %vm329, %v339, 0
        %vm344 = vcmask 1043456
        %v346 = vsel %vm344, %v340, 0
        %348 = vmatprep.subr.bf16.mxu0 0
        %349 = vmatpush1.bf16.msra.mxu0 0
        %350 = vmatprep.subr.bf16.mxu0 0
        %351 = vmatpush1.bf16.msra.mxu0 0
        %352 = vmatprep.subr.bf16.mxu0 0
        %353 = vmatpush1.bf16.msra.mxu0 0
        %354 = vmatprep.subr.bf16.mxu0 0
        %355 = vmatpush1.bf16.msra.mxu0 0
        %356 = vmatprep.subr.bf16.mxu0 0
        %357 = vmatpush1.bf16.msra.mxu0 0
        %358 = vmatprep.subr.bf16.mxu0 0
        %359 = vmatpush1.bf16.msra.mxu0 0
        %360 = vmatprep.subr.bf16.mxu0 0
        %361 = vmatpush1.bf16.msra.mxu0 0
        %362 = vmatprep.subr.bf16.mxu0 0
        %363 = vmatpush1.bf16.msra.mxu0 %v346
        %364 = vmatprep.subr.bf16.mxu0 0
        %365 = vmatpush2.bf16.msra.mxu0 0
        %366 = vmatprep.subr.bf16.mxu0 0
        %367 = vmatpush2.bf16.msra.mxu0 0
        %368 = vmatprep.subr.bf16.mxu0 0
        %369 = vmatpush2.bf16.msra.mxu0 0
        %370 = vmatprep.subr.bf16.mxu0 0
        %371 = vmatpush2.bf16.msra.mxu0 0
        %372 = vmatprep.subr.bf16.mxu0 0
        %373 = vmatpush2.bf16.msra.mxu0 0
        %374 = vmatprep.subr.bf16.mxu0 0
        %375 = vmatpush2.bf16.msra.mxu0 0
        %376 = vmatprep.subr.bf16.mxu0 0
        %377 = vmatpush2.bf16.msra.mxu0 0
        %378 = vmatprep.subr.bf16.mxu0 0
        %379 = vmatpush2.bf16.msra.mxu0 0
        %380 = vmatprep.mubr.bf16.mxu0 0
        %381 = vmatmul.mubr.bf16.gmra.mxu0 %v342
        %v382 = vpop.f32.mrf.mxu0
        %v383 = vadd.f32 0.0, %v382
        %v384 = vpop.f32.mrf.mxu0
        %v385 = vpop.f32.mrf.mxu0
        %v386 = vpop.f32.mrf.mxu0
        %387 = vdwg.mxu0
        %v388 = vrcp.pop %v338
        %v389 = vmul.f32 %v383, %v388
        %390 = vst [vmem:[%s173] sm:$0xff] %v389
        %s391 = sand.u32 %s75, 1
        %s392 = scalar_lea.sflag [#allocation4], %s391
        %s393 = sand.u32 %s75, 1
        %s394 = smul.addr %s393, 8
        %s395 = scalar_lea.vmem [#allocation7], %s394
        // Predicated region
        $region37: #{tpu_custom_call.1} parent=27 // pred_check
          %p396 = pneg %p85
        $region38: #{tpu_custom_call.1} parent=27 // pred_check_branch
          %398 = sbr.rel (%p396) target = $region40
        $region39: #{tpu_custom_call.1} parent=27 // pred_region
          %s400 = ssub.s32 128, 128
          %401 = vsyncadd %s392, %s400
          %s402 = smul.addr %s20, 128
          %s403 = scalar_lea.hbm %s2, %s402
          %s405 = sshll.u32 %s395, 4
          %s406 = int_to_ptr.vmem [resolvable:$true] %s405
          %408 = dma.vmem_to_hbm [thread:$0]  %s406, 128, %s403, %s392
        $region40: #{tpu_custom_call.1} parent=27 // pred_fallthru
          _
      $region28: #{tpu_custom_call.1} parent=5 // pred_fallthru
        _
      %p409 = scmp.le.s32.totalorder 2, %s15
      // Predicated region
      $region41: #{tpu_custom_call.1} parent=5 // pred_check
        %p410 = pneg %p409
      $region42: #{tpu_custom_call.1} parent=5 // pred_check_branch
        %412 = sbr.rel (%p410) target = $region44
      $region43: #{tpu_custom_call.1} parent=5 // pred_region
        %s413 = ssub.s32 %s15, 2
        // Predicated region
        $region45: #{tpu_custom_call.1} parent=43 // pred_check
          %p414 = pneg %p91
        $region46: #{tpu_custom_call.1} parent=43 // pred_check_branch
          %416 = sbr.rel (%p414) target = $region48
        $region47: #{tpu_custom_call.1} parent=43 // pred_region
          %s417 = sand.u32 %s76, 1
          %s418 = scalar_lea.sflag [#allocation4], %s417
          %s419 = sand.u32 %s76, 1
          %s420 = smul.addr %s419, 8
          %s421 = scalar_lea.vmem [#allocation7], %s420
          %422 = dma.done %s418, 128
        $region48: #{tpu_custom_call.1} parent=43 // pred_fallthru
          _
      $region44: #{tpu_custom_call.1} parent=5 // pred_fallthru
        _
    $region6: #{tpu_custom_call.1} parent=1 // loop_footer
      %s19 = sadd.s32 1, %s15
    $region7: #{tpu_custom_call.1} parent=1 // loop_footer_branch
      %14 = sbr.rel target = $region3
    $region8: #{tpu_custom_call.1} parent=1 // loop_exit
      _
    %423 = vsyncpa [#allocation3], 1
    %s424 = scalar_lea.sflag [#allocation3], 1
    %425 = vsyncpa %s424, 1
    %426 = vsyncpa [#allocation6], 1
    %427 = vsyncpa [#allocation4], 1
    %s428 = scalar_lea.sflag [#allocation4], 1
    %429 = vsyncpa %s428, 1

</llo_original>
